<compile_context>
chip_gen: v7x
topology: tpu7x:2x2x1
jax: 0.10.0
libtpu: 0.0.40
codegen_flags: <defaults>
</compile_context>

<pallas_src>
import functools

import jax
import jax.numpy as jnp
from jax import lax
from jax.experimental import pallas as pl
from jax.experimental.pallas import tpu as pltpu

EPS = 1e-6

_PAR1 = pltpu.CompilerParams(dimension_semantics=("parallel",))


# ----------------------------------------------------------------------------
# Spec helpers
# ----------------------------------------------------------------------------
def _row_tile(n, cap):
    # Full extent if it fits (legal even when n is not a multiple of 8, since the
    # block then equals the full dim); otherwise a multiple-of-8 tile with a
    # masked tail block.  All kernels below are row-independent, so partial tail
    # blocks are safe.
    return n if n <= cap else cap


def _row_spec(rt, d):
    return pl.BlockSpec((rt, d), lambda i: (i, 0))


def _resident(arr):
    zeros = (0,) * arr.ndim
    return pl.BlockSpec(arr.shape, lambda i: zeros)   # same block every step -> stays in VMEM


# ----------------------------------------------------------------------------
# Kernels
# ----------------------------------------------------------------------------
def layernorm_kernel(x_ref, g_ref, b_ref, o_ref):
    # Annotated-transformer LayerNorm: g * (x - mean) / (std + eps) + b  (unbiased std)
    x = x_ref[...].astype(jnp.float32)
    d = x.shape[-1]
    mean = jnp.mean(x, axis=-1, keepdims=True)
    cen = x - mean
    var = jnp.sum(cen * cen, axis=-1, keepdims=True) / (d - 1)
    y = g_ref[...] * cen / (jnp.sqrt(var) + EPS) + b_ref[...]
    o_ref[...] = y.astype(o_ref.dtype)


def ln_qkv_kernel(x_ref, g_ref, b_ref, wq_ref, bq_ref, wk_ref, bk_ref,
                  wv_ref, bv_ref, q_ref, k_ref, v_ref):
    # Fused: y = LayerNorm(x); Q = y Wq + bq; K = y Wk + bk; V = y Wv + bv
    x = x_ref[...].astype(jnp.float32)
    d = x.shape[-1]
    mean = jnp.mean(x, axis=-1, keepdims=True)
    cen = x - mean
    var = jnp.sum(cen * cen, axis=-1, keepdims=True) / (d - 1)
    y = g_ref[...] * cen / (jnp.sqrt(var) + EPS) + b_ref[...]
    q_ref[...] = (jnp.dot(y, wq_ref[...], preferred_element_type=jnp.float32)
                  + bq_ref[...]).astype(q_ref.dtype)
    k_ref[...] = (jnp.dot(y, wk_ref[...], preferred_element_type=jnp.float32)
                  + bk_ref[...]).astype(k_ref.dtype)
    v_ref[...] = (jnp.dot(y, wv_ref[...], preferred_element_type=jnp.float32)
                  + bv_ref[...]).astype(v_ref.dtype)


def mha_kernel(q_ref, k_ref, v_ref, m_ref, o_ref, *, num_heads):
    # One batch element: all heads, statically unrolled.  Scale folded into q.
    d = q_ref.shape[2]
    dh = d // num_heads
    scale = 1.0 / (float(dh) ** 0.5)
    q = q_ref[0].astype(jnp.float32) * jnp.float32(scale)   # (S, D)
    k = k_ref[0].astype(jnp.float32)                        # (S, D)
    v = v_ref[0].astype(jnp.float32)                        # (S, D)
    mask = m_ref[0]                                         # (S, S)
    neg = jnp.float32(-1e9)
    parts = []
    for h in range(num_heads):                              # static unroll
        qh = q[:, h * dh:(h + 1) * dh]
        kh = k[:, h * dh:(h + 1) * dh]
        vh = v[:, h * dh:(h + 1) * dh]
        # Contract the Dh axes directly (no explicit k.T materialization).
        scores = lax.dot_general(qh, kh, (((1,), (1,)), ((), ())),
                                 preferred_element_type=jnp.float32)   # (S, S)
        scores = jnp.where(mask == 0, neg, scores)
        smax = jnp.max(scores, axis=-1, keepdims=True)
        e = jnp.exp(scores - smax)
        denom = jnp.sum(e, axis=-1, keepdims=True)
        probs = e * pl.reciprocal(denom, approx=True)
        parts.append(jnp.dot(probs, vh, preferred_element_type=jnp.float32))
    # Single lane-dense (S, D) store (heads already in the right column order).
    o_ref[0] = jnp.concatenate(parts, axis=-1).astype(o_ref.dtype)


def proj_residual_kernel(res_ref, x_ref, w_ref, b_ref, o_ref):
    # o = residual + x @ W + b   (attention output projection + residual add)
    y = jnp.dot(x_ref[...].astype(jnp.float32), w_ref[...],
                preferred_element_type=jnp.float32)
    o_ref[...] = (res_ref[...].astype(jnp.float32) + y + b_ref[...]).astype(o_ref.dtype)


def ffn_sublayer_kernel(x_ref, g_ref, be_ref, w1_ref, b1_ref, w2_ref, b2_ref, o_ref):
    # SublayerConnection around PositionwiseFeedForward:
    #   o = x + W2 @ relu(W1 @ LayerNorm(x) + b1) + b2
    x = x_ref[...].astype(jnp.float32)
    d = x.shape[-1]
    mean = jnp.mean(x, axis=-1, keepdims=True)
    cen = x - mean
    var = jnp.sum(cen * cen, axis=-1, keepdims=True) / (d - 1)
    y = g_ref[...] * cen / (jnp.sqrt(var) + EPS) + be_ref[...]
    hid = jnp.dot(y, w1_ref[...], preferred_element_type=jnp.float32) + b1_ref[...]
    hid = jnp.maximum(hid, 0.0)
    out = x + jnp.dot(hid, w2_ref[...], preferred_element_type=jnp.float32) + b2_ref[...]
    o_ref[...] = out.astype(o_ref.dtype)


# ----------------------------------------------------------------------------
# Pallas wrappers (tiled + pipelined)
# ----------------------------------------------------------------------------
def layernorm(x2d, g, b, row_cap=512):
    n, d = x2d.shape
    rt = _row_tile(n, row_cap)
    return pl.pallas_call(
        layernorm_kernel,
        out_shape=jax.ShapeDtypeStruct((n, d), x2d.dtype),
        grid=(pl.cdiv(n, rt),),
        in_specs=[_row_spec(rt, d), _resident(g), _resident(b)],
        out_specs=_row_spec(rt, d),
        compiler_params=_PAR1,
    )(x2d, g, b)


def ln_qkv(x2d, g, b, wq, bq, wk, bk, wv, bv, row_cap=256):
    n, d = x2d.shape
    rt = _row_tile(n, row_cap)
    row = _row_spec(rt, d)
    return pl.pallas_call(
        ln_qkv_kernel,
        out_shape=(jax.ShapeDtypeStruct((n, d), x2d.dtype),) * 3,
        grid=(pl.cdiv(n, rt),),
        in_specs=[row, _resident(g), _resident(b),
                  _resident(wq), _resident(bq),
                  _resident(wk), _resident(bk),
                  _resident(wv), _resident(bv)],
        out_specs=(row, row, row),
        compiler_params=_PAR1,
    )(x2d, g, b, wq, bq, wk, bk, wv, bv)


def mha_attention(q, k, v, mask, num_heads):
    # q, k, v: (B, S, D); mask: (B, S, S) (nonzero = attend, 0 = masked)
    bsz, s, d = q.shape
    blk = pl.BlockSpec((1, s, d), lambda b: (b, 0, 0))
    m_spec = pl.BlockSpec((1, s, s), lambda b: (b, 0, 0))
    return pl.pallas_call(
        functools.partial(mha_kernel, num_heads=num_heads),
        out_shape=jax.ShapeDtypeStruct((bsz, s, d), q.dtype),
        grid=(bsz,),
        in_specs=[blk, blk, blk, m_spec],
        out_specs=blk,
        compiler_params=_PAR1,
    )(q, k, v, mask)


def proj_residual(res2d, x2d, w, b, row_cap=512):
    n, d = x2d.shape
    dout = w.shape[1]
    rt = _row_tile(n, row_cap)
    return pl.pallas_call(
        proj_residual_kernel,
        out_shape=jax.ShapeDtypeStruct((n, dout), res2d.dtype),
        grid=(pl.cdiv(n, rt),),
        in_specs=[_row_spec(rt, dout), _row_spec(rt, d), _resident(w), _resident(b)],
        out_specs=_row_spec(rt, dout),
        compiler_params=_PAR1,
    )(res2d, x2d, w, b)


def ffn_sublayer(x, g, be, w1, b1, w2, b2, row_cap=256):
    # x: (B, T, D)  ->  x + FFN(LayerNorm(x)), fused and row-tiled.
    bsz, t, d = x.shape
    n = bsz * t
    rt = _row_tile(n, row_cap)
    x2d = x.reshape(n, d)
    out = pl.pallas_call(
        ffn_sublayer_kernel,
        out_shape=jax.ShapeDtypeStruct((n, d), x.dtype),
        grid=(pl.cdiv(n, rt),),
        in_specs=[_row_spec(rt, d), _resident(g), _resident(be),
                  _resident(w1), _resident(b1), _resident(w2), _resident(b2)],
        out_specs=_row_spec(rt, d),
        compiler_params=_PAR1,
    )(x2d, g, be, w1, b1, w2, b2)
    return out.reshape(bsz, t, d)


# ----------------------------------------------------------------------------
# Model forward (mirrors MultiwayEncoder / MultiwayEncoderLayer semantics)
# ----------------------------------------------------------------------------
def attn_sublayer(x, mask, lp, num_heads):
    # SublayerConnection: x + OutProj(MultiHeadAttn(LayerNorm(x)))
    bsz, s, d = x.shape
    x2d = x.reshape(bsz * s, d)
    q, k, v = ln_qkv(x2d, lp["attn_ln_g"], lp["attn_ln_b"],
                     lp["w_q"], lp["b_q"], lp["w_k"], lp["b_k"],
                     lp["w_v"], lp["b_v"])
    ctx = mha_attention(q.reshape(bsz, s, d), k.reshape(bsz, s, d),
                        v.reshape(bsz, s, d), mask, num_heads)      # (B, S, D)
    out = proj_residual(x2d, ctx.reshape(bsz * s, d), lp["w_o"], lp["b_o"])
    return out.reshape(bsz, s, d)


def multiway_layer_forward(lp, x, mask, hv_length, mode, num_heads):
    x = attn_sublayer(x, mask, lp, num_heads)
    if mode == "v":
        x = ffn_sublayer(x, lp["ff_ln_g"], lp["ff_ln_b"],
                         lp["ff_w1"], lp["ff_b1"], lp["ff_w2"], lp["ff_b2"])
    elif mode == "t":
        x = ffn_sublayer(x, lp["fft_ln_g"], lp["fft_ln_b"],
                         lp["fft_w1"], lp["fft_b1"], lp["fft_w2"], lp["fft_b2"])
    else:
        if hv_length is None:
            raise ValueError("hv_length is None")
        x_v = x[:, :hv_length]
        x_l = x[:, hv_length:]
        x_v = ffn_sublayer(x_v, lp["ff_ln_g"], lp["ff_ln_b"],
                           lp["ff_w1"], lp["ff_b1"], lp["ff_w2"], lp["ff_b2"])
        xt_in = jnp.concatenate([x_v[:, :1], x_l], axis=1)
        x_l = ffn_sublayer(xt_in, lp["fft_ln_g"], lp["fft_ln_b"],
                           lp["fft_w1"], lp["fft_b1"], lp["fft_w2"], lp["fft_b2"])
        x = jnp.concatenate([x_v, x_l[:, 1:]], axis=1)
    return x


def multiway_encoder_forward(params, h, mask, hv_length, mode, num_heads):
    for lp in params["layers"]:
        h = multiway_layer_forward(lp, h, mask, hv_length, mode, num_heads)
    bsz, s, d = h.shape
    h = layernorm(h.reshape(bsz * s, d), params["norm_g"], params["norm_b"])
    return h.reshape(bsz, s, d)


# ----------------------------------------------------------------------------
# Deterministic parameter init (synthetic; matches __init__ shapes).
# Biases / LN affine params are pre-shaped to (1, dim) (hoisted out of hot path).
# ----------------------------------------------------------------------------
def init_params(key, embed_dim, num_layer, ff_dim):
    keys = iter(jax.random.split(key, num_layer * 8 + 1))

    def w(shape):
        return (0.02 * jax.random.normal(next(keys), shape)).astype(jnp.float32)

    def vec(dim, value=0.0):
        return jnp.full((1, dim), value, jnp.float32)

    layers = []
    for _ in range(num_layer):
        layers.append(dict(
            # MultiHeadedAttention: q/k/v projections + output proj
            w_q=w((embed_dim, embed_dim)), b_q=vec(embed_dim),
            w_k=w((embed_dim, embed_dim)), b_k=vec(embed_dim),
            w_v=w((embed_dim, embed_dim)), b_v=vec(embed_dim),
            w_o=w((embed_dim, embed_dim)), b_o=vec(embed_dim),
            # sublayer_attn LayerNorm
            attn_ln_g=vec(embed_dim, 1.0), attn_ln_b=vec(embed_dim),
            # feed_forward (visual branch) + sublayer_ff LayerNorm
            ff_w1=w((embed_dim, ff_dim)), ff_b1=vec(ff_dim),
            ff_w2=w((ff_dim, embed_dim)), ff_b2=vec(embed_dim),
            ff_ln_g=vec(embed_dim, 1.0), ff_ln_b=vec(embed_dim),
            # feed_forward_t (text branch) + sublayer_ff_t LayerNorm
            fft_w1=w((embed_dim, ff_dim)), fft_b1=vec(ff_dim),
            fft_w2=w((ff_dim, embed_dim)), fft_b2=vec(embed_dim),
            fft_ln_g=vec(embed_dim, 1.0), fft_ln_b=vec(embed_dim),
        ))
    return dict(layers=layers, norm_g=vec(embed_dim, 1.0), norm_b=vec(embed_dim))


# ----------------------------------------------------------------------------
if __name__ == "__main__":
    EMBED_DIM = 32
    NUM_LAYER = 2
    NUM_HEADS = 4
    FF_DIM = 64
    B, S = 2, 10
    HV_LENGTH = 6

    key = jax.random.PRNGKey(0)
    k_param, k_x = jax.random.split(key)
    params = init_params(k_param, EMBED_DIM, NUM_LAYER, FF_DIM)

    h = jax.random.normal(k_x, (B, S, EMBED_DIM), dtype=jnp.float32)
    mask = jnp.ones((B, S, S), dtype=jnp.float32)   # all positions attend

    fwd = functools.partial(
        multiway_encoder_forward,
        hv_length=HV_LENGTH,
        mode="m",
        num_heads=NUM_HEADS,
    )
    out = fwd(params, h, mask)
    out = jax.block_until_ready(out)
    assert out.shape == (B, S, EMBED_DIM)
    assert bool(jnp.all(jnp.isfinite(out)))
    print("KERNEL_OK")
</pallas_src>

<mosaic_0001>
module attributes {stable_mosaic.version = 11 : i64} {
  func.func @ln_qkv_kernel(%arg0: i32, %arg1: memref<20x32xf32, #tpu.memory_space<vmem>>, %arg2: memref<1x32xf32, #tpu.memory_space<vmem>>, %arg3: memref<1x32xf32, #tpu.memory_space<vmem>>, %arg4: memref<32x32xf32, #tpu.memory_space<vmem>>, %arg5: memref<1x32xf32, #tpu.memory_space<vmem>>, %arg6: memref<32x32xf32, #tpu.memory_space<vmem>>, %arg7: memref<1x32xf32, #tpu.memory_space<vmem>>, %arg8: memref<32x32xf32, #tpu.memory_space<vmem>>, %arg9: memref<1x32xf32, #tpu.memory_space<vmem>>, %arg10: memref<20x32xf32, #tpu.memory_space<vmem>>, %arg11: memref<20x32xf32, #tpu.memory_space<vmem>>, %arg12: memref<20x32xf32, #tpu.memory_space<vmem>>) attributes {dimension_semantics = [#tpu.dimension_semantics<parallel>], iteration_bounds = array<i64: 1>, scalar_prefetch = 0 : i64, scratch_operands = 0 : i64, tpu.core_type = #tpu.core_type<tc>, window_params = [{transform_indices = @transform_0, window_bounds = array<i64: 20, 32>}, {pipeline_mode = #tpu.pipeline_mode<synchronous>, transform_indices = @transform_1, window_bounds = array<i64: 1, 32>}, {pipeline_mode = #tpu.pipeline_mode<synchronous>, transform_indices = @transform_2, window_bounds = array<i64: 1, 32>}, {pipeline_mode = #tpu.pipeline_mode<synchronous>, transform_indices = @transform_3, window_bounds = array<i64: 32, 32>}, {pipeline_mode = #tpu.pipeline_mode<synchronous>, transform_indices = @transform_4, window_bounds = array<i64: 1, 32>}, {pipeline_mode = #tpu.pipeline_mode<synchronous>, transform_indices = @transform_5, window_bounds = array<i64: 32, 32>}, {pipeline_mode = #tpu.pipeline_mode<synchronous>, transform_indices = @transform_6, window_bounds = array<i64: 1, 32>}, {pipeline_mode = #tpu.pipeline_mode<synchronous>, transform_indices = @transform_7, window_bounds = array<i64: 32, 32>}, {pipeline_mode = #tpu.pipeline_mode<synchronous>, transform_indices = @transform_8, window_bounds = array<i64: 1, 32>}, {transform_indices = @transform_9, window_bounds = array<i64: 20, 32>}, {transform_indices = @transform_10, window_bounds = array<i64: 20, 32>}, {transform_indices = @transform_11, window_bounds = array<i64: 20, 32>}]} {
    %c0 = arith.constant 0 : index
    %c0_0 = arith.constant 0 : index
    %0 = vector.load %arg1[%c0, %c0_0] : memref<20x32xf32, #tpu.memory_space<vmem>>, vector<20x32xf32>
    %cst = arith.constant dense<0.000000e+00> : vector<20xf32>
    %1 = vector.multi_reduction <add>, %0, %cst [1] : vector<20x32xf32> to vector<20xf32>
    %2 = vector.shape_cast %1 : vector<20xf32> to vector<20x1xf32>
    %cst_1 = arith.constant 3.200000e+01 : f32
    %3 = vector.broadcast %cst_1 : f32 to vector<20x1xf32>
    %4 = arith.divf %2, %3 : vector<20x1xf32>
    %5 = vector.broadcast %4 : vector<20x1xf32> to vector<20x32xf32>
    %6 = arith.subf %0, %5 : vector<20x32xf32>
    %7 = arith.mulf %6, %6 : vector<20x32xf32>
    %cst_2 = arith.constant dense<0.000000e+00> : vector<20xf32>
    %8 = vector.multi_reduction <add>, %7, %cst_2 [1] : vector<20x32xf32> to vector<20xf32>
    %9 = vector.shape_cast %8 : vector<20xf32> to vector<20x1xf32>
    %cst_3 = arith.constant 3.100000e+01 : f32
    %10 = vector.broadcast %cst_3 : f32 to vector<20x1xf32>
    %11 = arith.divf %9, %10 : vector<20x1xf32>
    %c0_4 = arith.constant 0 : index
    %c0_5 = arith.constant 0 : index
    %12 = vector.load %arg2[%c0_4, %c0_5] : memref<1x32xf32, #tpu.memory_space<vmem>>, vector<1x32xf32>
    %13 = vector.broadcast %12 : vector<1x32xf32> to vector<20x32xf32>
    %14 = arith.mulf %13, %6 : vector<20x32xf32>
    %15 = math.sqrt %11 : vector<20x1xf32>
    %cst_6 = arith.constant 9.99999997E-7 : f32
    %16 = vector.broadcast %cst_6 : f32 to vector<20x1xf32>
    %17 = arith.addf %15, %16 : vector<20x1xf32>
    %18 = vector.broadcast %17 : vector<20x1xf32> to vector<20x32xf32>
    %19 = arith.divf %14, %18 : vector<20x32xf32>
    %c0_7 = arith.constant 0 : index
    %c0_8 = arith.constant 0 : index
    %20 = vector.load %arg3[%c0_7, %c0_8] : memref<1x32xf32, #tpu.memory_space<vmem>>, vector<1x32xf32>
    %21 = vector.broadcast %20 : vector<1x32xf32> to vector<20x32xf32>
    %22 = arith.addf %19, %21 : vector<20x32xf32>
    %c0_9 = arith.constant 0 : index
    %c0_10 = arith.constant 0 : index
    %23 = vector.load %arg4[%c0_9, %c0_10] : memref<32x32xf32, #tpu.memory_space<vmem>>, vector<32x32xf32>
    %cst_11 = arith.constant dense<0.000000e+00> : vector<20x32xf32>
    %24 = tpu.matmul %22, %23, %cst_11 {dimension_numbers = #tpu.dot_dimension_numbers<[1], [0], [0], [1], [0, 0, 1, 1], [], []>} : vector<20x32xf32>, vector<32x32xf32>, vector<20x32xf32> -> vector<20x32xf32>
    %c0_12 = arith.constant 0 : index
    %c0_13 = arith.constant 0 : index
    %25 = vector.load %arg5[%c0_12, %c0_13] : memref<1x32xf32, #tpu.memory_space<vmem>>, vector<1x32xf32>
    %26 = vector.broadcast %25 : vector<1x32xf32> to vector<20x32xf32>
    %27 = arith.addf %24, %26 : vector<20x32xf32>
    %c0_14 = arith.constant 0 : index
    %c0_15 = arith.constant 0 : index
    %28 = vector.load %arg10[%c0_14, %c0_15] : memref<20x32xf32, #tpu.memory_space<vmem>>, vector<20x32xf32>
    tpu.vector_store %arg10[%c0_14, %c0_15], %27 {strides = array<i32>} : memref<20x32xf32, #tpu.memory_space<vmem>>, vector<20x32xf32>,
    %c0_16 = arith.constant 0 : index
    %c0_17 = arith.constant 0 : index
    %29 = vector.load %arg6[%c0_16, %c0_17] : memref<32x32xf32, #tpu.memory_space<vmem>>, vector<32x32xf32>
    %cst_18 = arith.constant dense<0.000000e+00> : vector<20x32xf32>
    %30 = tpu.matmul %22, %29, %cst_18 {dimension_numbers = #tpu.dot_dimension_numbers<[1], [0], [0], [1], [0, 0, 1, 1], [], []>} : vector<20x32xf32>, vector<32x32xf32>, vector<20x32xf32> -> vector<20x32xf32>
    %c0_19 = arith.constant 0 : index
    %c0_20 = arith.constant 0 : index
    %31 = vector.load %arg7[%c0_19, %c0_20] : memref<1x32xf32, #tpu.memory_space<vmem>>, vector<1x32xf32>
    %32 = vector.broadcast %31 : vector<1x32xf32> to vector<20x32xf32>
    %33 = arith.addf %30, %32 : vector<20x32xf32>
    %c0_21 = arith.constant 0 : index
    %c0_22 = arith.constant 0 : index
    %34 = vector.load %arg11[%c0_21, %c0_22] : memref<20x32xf32, #tpu.memory_space<vmem>>, vector<20x32xf32>
    tpu.vector_store %arg11[%c0_21, %c0_22], %33 {strides = array<i32>} : memref<20x32xf32, #tpu.memory_space<vmem>>, vector<20x32xf32>,
    %c0_23 = arith.constant 0 : index
    %c0_24 = arith.constant 0 : index
    %35 = vector.load %arg8[%c0_23, %c0_24] : memref<32x32xf32, #tpu.memory_space<vmem>>, vector<32x32xf32>
    %cst_25 = arith.constant dense<0.000000e+00> : vector<20x32xf32>
    %36 = tpu.matmul %22, %35, %cst_25 {dimension_numbers = #tpu.dot_dimension_numbers<[1], [0], [0], [1], [0, 0, 1, 1], [], []>} : vector<20x32xf32>, vector<32x32xf32>, vector<20x32xf32> -> vector<20x32xf32>
    %c0_26 = arith.constant 0 : index
    %c0_27 = arith.constant 0 : index
    %37 = vector.load %arg9[%c0_26, %c0_27] : memref<1x32xf32, #tpu.memory_space<vmem>>, vector<1x32xf32>
    %38 = vector.broadcast %37 : vector<1x32xf32> to vector<20x32xf32>
    %39 = arith.addf %36, %38 : vector<20x32xf32>
    %c0_28 = arith.constant 0 : index
    %c0_29 = arith.constant 0 : index
    %40 = vector.load %arg12[%c0_28, %c0_29] : memref<20x32xf32, #tpu.memory_space<vmem>>, vector<20x32xf32>
    tpu.vector_store %arg12[%c0_28, %c0_29], %39 {strides = array<i32>} : memref<20x32xf32, #tpu.memory_space<vmem>>, vector<20x32xf32>,
    return
  }
  func.func @transform_0(%arg0: i32) -> (i32, i32) {
    %c0_i32 = arith.constant 0 : i32
    %c0_i32_0 = arith.constant 0 : i32
    return %arg0, %c0_i32 : i32, i32
  }
  func.func @transform_1(%arg0: i32) -> (i32, i32) {
    %c0_i32 = arith.constant 0 : i32
    %c0_i32_0 = arith.constant 0 : i32
    %c0_i32_1 = arith.constant 0 : i32
    return %c0_i32, %c0_i32_0 : i32, i32
  }
  func.func @transform_2(%arg0: i32) -> (i32, i32) {
    %c0_i32 = arith.constant 0 : i32
    %c0_i32_0 = arith.constant 0 : i32
    %c0_i32_1 = arith.constant 0 : i32
    return %c0_i32, %c0_i32_0 : i32, i32
  }
  func.func @transform_3(%arg0: i32) -> (i32, i32) {
    %c0_i32 = arith.constant 0 : i32
    %c0_i32_0 = arith.constant 0 : i32
    %c0_i32_1 = arith.constant 0 : i32
    return %c0_i32, %c0_i32_0 : i32, i32
  }
  func.func @transform_4(%arg0: i32) -> (i32, i32) {
    %c0_i32 = arith.constant 0 : i32
    %c0_i32_0 = arith.constant 0 : i32
    %c0_i32_1 = arith.constant 0 : i32
    return %c0_i32, %c0_i32_0 : i32, i32
  }
  func.func @transform_5(%arg0: i32) -> (i32, i32) {
    %c0_i32 = arith.constant 0 : i32
    %c0_i32_0 = arith.constant 0 : i32
    %c0_i32_1 = arith.constant 0 : i32
    return %c0_i32, %c0_i32_0 : i32, i32
  }
  func.func @transform_6(%arg0: i32) -> (i32, i32) {
    %c0_i32 = arith.constant 0 : i32
    %c0_i32_0 = arith.constant 0 : i32
    %c0_i32_1 = arith.constant 0 : i32
    return %c0_i32, %c0_i32_0 : i32, i32
  }
  func.func @transform_7(%arg0: i32) -> (i32, i32) {
    %c0_i32 = arith.constant 0 : i32
    %c0_i32_0 = arith.constant 0 : i32
    %c0_i32_1 = arith.constant 0 : i32
    return %c0_i32, %c0_i32_0 : i32, i32
  }
  func.func @transform_8(%arg0: i32) -> (i32, i32) {
    %c0_i32 = arith.constant 0 : i32
    %c0_i32_0 = arith.constant 0 : i32
    %c0_i32_1 = arith.constant 0 : i32
    return %c0_i32, %c0_i32_0 : i32, i32
  }
  func.func @transform_9(%arg0: i32) -> (i32, i32) {
    %c0_i32 = arith.constant 0 : i32
    %c0_i32_0 = arith.constant 0 : i32
    return %arg0, %c0_i32 : i32, i32
  }
  func.func @transform_10(%arg0: i32) -> (i32, i32) {
    %c0_i32 = arith.constant 0 : i32
    %c0_i32_0 = arith.constant 0 : i32
    return %arg0, %c0_i32 : i32, i32
  }
  func.func @transform_11(%arg0: i32) -> (i32, i32) {
    %c0_i32 = arith.constant 0 : i32
    %c0_i32_0 = arith.constant 0 : i32
    return %arg0, %c0_i32 : i32, i32
  }
}

</mosaic_0001>

<llo_original>
// kernel: tpu_custom_call.1
$region0: #{tpu_custom_call.1}
  #allocation0 [shape = 'u32[]', space=smem, size = 0x4, offset = 0x4, fixed_abs, tag = 'smem constant byte address 0x4 - core index']
  #allocation1 [shape = 'u32[144,128]{1,0:T(1,128)}', space=vmem, size = 0x12000, scoped, tag = 'internal scratch']
  %s0 = inlined_call_operand.hbm [shape: f32[20,32], index: 0, kind: input, shape index: {}]
  %s1 = inlined_call_operand.vmem [shape: f32[1,32], index: 1, kind: input, shape index: {}]
  %s2 = inlined_call_operand.vmem [shape: f32[1,32], index: 2, kind: input, shape index: {}]
  %s3 = inlined_call_operand.hbm [shape: f32[32,32], index: 3, kind: input, shape index: {}]
  %s4 = inlined_call_operand.vmem [shape: f32[1,32], index: 4, kind: input, shape index: {}]
  %s5 = inlined_call_operand.hbm [shape: f32[32,32], index: 5, kind: input, shape index: {}]
  %s6 = inlined_call_operand.vmem [shape: f32[1,32], index: 6, kind: input, shape index: {}]
  %s7 = inlined_call_operand.hbm [shape: f32[32,32], index: 7, kind: input, shape index: {}]
  %s8 = inlined_call_operand.vmem [shape: f32[1,32], index: 8, kind: input, shape index: {}]
  %s9 = inlined_call_operand.hbm [shape: f32[20,32], index: 9, kind: output, shape index: {0}]
  %s10 = inlined_call_operand.hbm [shape: f32[20,32], index: 10, kind: output, shape index: {1}]
  %s11 = inlined_call_operand.hbm [shape: f32[20,32], index: 11, kind: output, shape index: {2}]
  %12 = xla_tuple %s9, %s10, %s11
  %s13 = sld [smem:[#allocation0]]
  $region78: #{tpu_custom_call.1} parent=0
    _
  %s15 = ssub.s32 1, %s13
  %s16 = scalar_select 0, %s15, %s13
  $region1: #{tpu_custom_call.1} parent=0
    #allocation2 [shape = 'u8[12288]{0}', space=vmem, size = 0x3000, scoped, tag = 'input window, operand 0, single buffered']
    #allocation3 [shape = 's32[1]{0}', space=sflag, size = 0x4, scoped, tag = 'scoped memory for tpu_custom_call.1']
    #allocation4 [shape = 's32[1]{0}', space=sflag, size = 0x4, scoped, tag = 'scoped memory for tpu_custom_call.1']
    #allocation5 [shape = 'u8[16384]{0}', space=vmem, size = 0x4000, scoped, tag = 'input window, operand 3, single buffered']
    #allocation6 [shape = 's32[1]{0}', space=sflag, size = 0x4, scoped, tag = 'scoped memory for tpu_custom_call.1']
    #allocation7 [shape = 'u8[16384]{0}', space=vmem, size = 0x4000, scoped, tag = 'input window, operand 5, single buffered']
    #allocation8 [shape = 'u8[16384]{0}', space=vmem, size = 0x4000, scoped, tag = 'input window, operand 7, single buffered']
    #allocation9 [shape = 's32[1]{0}', space=sflag, size = 0x4, scoped, tag = 'scoped memory for tpu_custom_call.1']
    #allocation10 [shape = 'u8[12288]{0}', space=vmem, size = 0x3000, scoped, tag = 'output window, operand 0, single buffered']
    #allocation11 [shape = 'u8[12288]{0}', space=vmem, size = 0x3000, scoped, tag = 'output window, operand 1, single buffered']
    #allocation12 [shape = 's32[1]{0}', space=sflag, size = 0x4, scoped, tag = 'scoped memory for tpu_custom_call.1']
    #allocation13 [shape = 'u8[12288]{0}', space=vmem, size = 0x3000, scoped, tag = 'output window, operand 2, single buffered']
    %17 = vsyncpa [#allocation3], 0
    %18 = vsyncpa [#allocation6], 0
    %19 = vsyncpa [#allocation9], 0
    %20 = vsyncpa [#allocation4], 0
    %21 = vsyncpa [#allocation12], 0
    // Predicated region
    $region2: #{tpu_custom_call.1} parent=1 // pred_check
      _
    $region3: #{tpu_custom_call.1} parent=1 // pred_check_branch
      %23 = sbr.rel (0) target = $region5
    $region4: #{tpu_custom_call.1} parent=1 // pred_region
      %s25 = ssub.s32 384, 384
      %26 = vsyncadd [#allocation3], %s25
      %s27 = sshll.u32 [#allocation2], 4
      %s28 = int_to_ptr.vmem [resolvable:$true] %s27
      %33 = dma.hbm_to_vmem [thread:$0]  %s0, 384, %s28, [#allocation3], 128, 128, 8
    $region5: #{tpu_custom_call.1} parent=1 // pred_fallthru
      _
    // Predicated region
    $region6: #{tpu_custom_call.1} parent=1 // pred_check
      _
    $region7: #{tpu_custom_call.1} parent=1 // pred_check_branch
      %35 = sbr.rel (0) target = $region9
    $region8: #{tpu_custom_call.1} parent=1 // pred_region
      _
    $region9: #{tpu_custom_call.1} parent=1 // pred_fallthru
      _
    // Predicated region
    $region10: #{tpu_custom_call.1} parent=1 // pred_check
      _
    $region11: #{tpu_custom_call.1} parent=1 // pred_check_branch
      %37 = sbr.rel (0) target = $region13
    $region12: #{tpu_custom_call.1} parent=1 // pred_region
      _
    $region13: #{tpu_custom_call.1} parent=1 // pred_fallthru
      _
    // Predicated region
    $region14: #{tpu_custom_call.1} parent=1 // pred_check
      _
    $region15: #{tpu_custom_call.1} parent=1 // pred_check_branch
      %39 = sbr.rel (0) target = $region17
    $region16: #{tpu_custom_call.1} parent=1 // pred_region
      %s41 = ssub.s32 512, 512
      %42 = vsyncadd [#allocation6], %s41
      %s43 = sshll.u32 [#allocation5], 4
      %s44 = int_to_ptr.vmem [resolvable:$true] %s43
      %49 = dma.hbm_to_vmem [thread:$0]  %s3, 512, %s44, [#allocation6], 128, 128, 8
    $region17: #{tpu_custom_call.1} parent=1 // pred_fallthru
      _
    // Predicated region
    $region18: #{tpu_custom_call.1} parent=1 // pred_check
      _
    $region19: #{tpu_custom_call.1} parent=1 // pred_check_branch
      %51 = sbr.rel (0) target = $region21
    $region20: #{tpu_custom_call.1} parent=1 // pred_region
      _
    $region21: #{tpu_custom_call.1} parent=1 // pred_fallthru
      _
    // Predicated region
    $region22: #{tpu_custom_call.1} parent=1 // pred_check
      _
    $region23: #{tpu_custom_call.1} parent=1 // pred_check_branch
      %53 = sbr.rel (0) target = $region25
    $region24: #{tpu_custom_call.1} parent=1 // pred_region
      %s55 = ssub.s32 512, 512
      %56 = vsyncadd [#allocation6], %s55
      %s57 = sshll.u32 [#allocation7], 4
      %s58 = int_to_ptr.vmem [resolvable:$true] %s57
      %63 = dma.hbm_to_vmem [thread:$0]  %s5, 512, %s58, [#allocation6], 128, 128, 8
    $region25: #{tpu_custom_call.1} parent=1 // pred_fallthru
      _
    // Predicated region
    $region26: #{tpu_custom_call.1} parent=1 // pred_check
      _
    $region27: #{tpu_custom_call.1} parent=1 // pred_check_branch
      %65 = sbr.rel (0) target = $region29
    $region28: #{tpu_custom_call.1} parent=1 // pred_region
      _
    $region29: #{tpu_custom_call.1} parent=1 // pred_fallthru
      _
    // Predicated region
    $region30: #{tpu_custom_call.1} parent=1 // pred_check
      _
    $region31: #{tpu_custom_call.1} parent=1 // pred_check_branch
      %67 = sbr.rel (0) target = $region33
    $region32: #{tpu_custom_call.1} parent=1 // pred_region
      %s69 = ssub.s32 512, 512
      %70 = vsyncadd [#allocation9], %s69
      %s71 = sshll.u32 [#allocation8], 4
      %s72 = int_to_ptr.vmem [resolvable:$true] %s71
      %77 = dma.hbm_to_vmem [thread:$0]  %s7, 512, %s72, [#allocation9], 128, 128, 8
    $region33: #{tpu_custom_call.1} parent=1 // pred_fallthru
      _
    // Predicated region
    $region34: #{tpu_custom_call.1} parent=1 // pred_check
      _
    $region35: #{tpu_custom_call.1} parent=1 // pred_check_branch
      %79 = sbr.rel (0) target = $region37
    $region36: #{tpu_custom_call.1} parent=1 // pred_region
      _
    $region37: #{tpu_custom_call.1} parent=1 // pred_fallthru
      _
    // Predicated region
    $region38: #{tpu_custom_call.1} parent=1 // pred_check
      _
    $region39: #{tpu_custom_call.1} parent=1 // pred_check_branch
      %81 = sbr.rel (0) target = $region41
    $region40: #{tpu_custom_call.1} parent=1 // pred_region
      %82 = dma.done [#allocation3], 384
    $region41: #{tpu_custom_call.1} parent=1 // pred_fallthru
      _
    // Predicated region
    $region42: #{tpu_custom_call.1} parent=1 // pred_check
      _
    $region43: #{tpu_custom_call.1} parent=1 // pred_check_branch
      %84 = sbr.rel (0) target = $region45
    $region44: #{tpu_custom_call.1} parent=1 // pred_region
      %85 = dma.done [#allocation6], 512
    $region45: #{tpu_custom_call.1} parent=1 // pred_fallthru
      _
    // Predicated region
    $region46: #{tpu_custom_call.1} parent=1 // pred_check
      _
    $region47: #{tpu_custom_call.1} parent=1 // pred_check_branch
      %87 = sbr.rel (0) target = $region49
    $region48: #{tpu_custom_call.1} parent=1 // pred_region
      %88 = dma.done [#allocation6], 512
    $region49: #{tpu_custom_call.1} parent=1 // pred_fallthru
      _
    // Predicated region
    $region50: #{tpu_custom_call.1} parent=1 // pred_check
      _
    $region51: #{tpu_custom_call.1} parent=1 // pred_check_branch
      %90 = sbr.rel (0) target = $region53
    $region52: #{tpu_custom_call.1} parent=1 // pred_region
      %91 = dma.done [#allocation9], 512
    $region53: #{tpu_custom_call.1} parent=1 // pred_fallthru
      _
    %v92 = vld [vmem:[#allocation2] sm:$0xff]
    %v93 = vld [vmem:[#allocation2 + $0x8] sm:$0xff]
    %v94 = vld [vmem:[#allocation2 + $0x10] sm:$0xf]
    %vm95 = vcmask 261120
    %v96 = vsel %vm95, %v92, 0.0
    %97 = vadd.xlane.f32.xlu0 %v96
    %v98 = vpop.xlane.xlu0 %97
    %v99 = vsel %vm95, %v93, 0.0
    %100 = vadd.xlane.f32.xlu0 %v99
    %v101 = vpop.xlane.xlu0 %100
    %vm102 = vcmask 257024
    %v103 = vsel %vm102, %v94, 0.0
    %104 = vadd.xlane.f32.xlu0 %v103
    %v105 = vpop.xlane.xlu0 %104
    %v106 = vrcp.pop 32.0
    %v107 = vmul.f32 %v98, %v106
    %v108 = vmul.f32 %v101, %v106
    %v109 = vmul.f32 %v105, %v106
    %v110 = vsub.f32 %v92, %v107
    %v111 = vsub.f32 %v93, %v108
    %v112 = vsub.f32 %v94, %v109
    %v113 = vmul.f32 %v110, %v110
    %v114 = vmul.f32 %v111, %v111
    %v115 = vmul.f32 %v112, %v112
    %v116 = vsel %vm95, %v113, 0.0
    %117 = vadd.xlane.f32.xlu0 %v116
    %v118 = vpop.xlane.xlu0 %117
    %v119 = vsel %vm95, %v114, 0.0
    %120 = vadd.xlane.f32.xlu0 %v119
    %v121 = vpop.xlane.xlu0 %120
    %v122 = vsel %vm102, %v115, 0.0
    %123 = vadd.xlane.f32.xlu0 %v122
    %v124 = vpop.xlane.xlu0 %123
    %v125 = vrcp.pop 31.0
    %v126 = vmul.f32 %v118, %v125
    %v127 = vmul.f32 %v121, %v125
    %v128 = vmul.f32 %v124, %v125
    %v129 = vld [vmem:[%s1] sm:$0x1]
    %v131 = vlaneseq
    %v132 = vshrl.u32 %v131, 7
    %v133 = vsub.s32 0, %v132
    %v134 = vrot.slane %v129, %v133
    %v136 = vmul.f32 %v134, %v110
    %v137 = vmul.f32 %v134, %v111
    %v138 = vmul.f32 %v134, %v112
    %v139 = vrsqrt.pop %v126
    %v140 = vmul.f32 %v126, %v139
    %vm141 = vcmp.eq.f32.partialorder %v126, inf
    %v142 = vsel %vm141, %v126, %v140
    %vm143 = vcmp.eq.f32.partialorder %v126, 0.0
    %v144 = vand.u32 %v126, 2147483648
    %v145 = vsel %vm143, %v144, %v142
    %v146 = vrsqrt.pop %v127
    %v147 = vmul.f32 %v127, %v146
    %vm148 = vcmp.eq.f32.partialorder %v127, inf
    %v149 = vsel %vm148, %v127, %v147
    %vm150 = vcmp.eq.f32.partialorder %v127, 0.0
    %v151 = vand.u32 %v127, 2147483648
    %v152 = vsel %vm150, %v151, %v149
    %v153 = vrsqrt.pop %v128
    %v154 = vmul.f32 %v128, %v153
    %vm155 = vcmp.eq.f32.partialorder %v128, inf
    %v156 = vsel %vm155, %v128, %v154
    %vm157 = vcmp.eq.f32.partialorder %v128, 0.0
    %v158 = vand.u32 %v128, 2147483648
    %v159 = vsel %vm157, %v158, %v156
    %v160 = vadd.f32 %v145, 1e-06
    %v161 = vadd.f32 %v152, 1e-06
    %v162 = vadd.f32 %v159, 1e-06
    %v163 = vrcp.pop %v160
    %v164 = vmul.f32 %v136, %v163
    %v165 = vrcp.pop %v161
    %v166 = vmul.f32 %v137, %v165
    %v167 = vrcp.pop %v162
    %v168 = vmul.f32 %v138, %v167
    %v169 = vld [vmem:[%s2] sm:$0x1]
    %v171 = vlaneseq
    %v172 = vshrl.u32 %v171, 7
    %v173 = vsub.s32 0, %v172
    %v174 = vrot.slane %v169, %v173
    %v176 = vadd.f32 %v164, %v174
    %v177 = vadd.f32 %v166, %v174
    %v178 = vadd.f32 %v168, %v174
    %v179 = vld [vmem:[#allocation5] sm:$0xff]
    %v180 = vld [vmem:[#allocation5 + $0x8] sm:$0xff]
    %v181 = vld [vmem:[#allocation5 + $0x10] sm:$0xff]
    %v182 = vld [vmem:[#allocation5 + $0x18] sm:$0xff]
    %v183 = vld [vmem:[%s4] sm:$0x1]
    %v185 = vlaneseq
    %v186 = vshrl.u32 %v185, 7
    %v187 = vsub.s32 0, %v186
    %v188 = vrot.slane %v183, %v187
    %v191 = vsel %vm95, %v176, 0
    %v194 = vsel %vm95, %v177, 0
    %v197 = vsel %vm95, %v178, 0
    %199 = vmatprep.subr.mxu0 0.0
    %200 = vmatpush1.msra.mxu0 %v179
    %201 = vmatprep.subr.mxu0 0.0
    %202 = vmatpush1.msra.mxu0 %v180
    %203 = vmatprep.subr.mxu0 0.0
    %204 = vmatpush1.msra.mxu0 %v181
    %205 = vmatprep.subr.mxu0 0.0
    %206 = vmatpush1.msra.mxu0 %v182
    %207 = vmatprep.subr.mxu0 0.0
    %208 = vmatpush1.msra.mxu0 0.0
    %209 = vmatprep.subr.mxu0 0.0
    %210 = vmatpush1.msra.mxu0 0.0
    %211 = vmatprep.subr.mxu0 0.0
    %212 = vmatpush1.msra.mxu0 0.0
    %213 = vmatprep.subr.mxu0 0.0
    %214 = vmatpush1.msra.mxu0 0.0
    %215 = vmatprep.subr.mxu0 0.0
    %216 = vmatpush1.msra.mxu0 0.0
    %217 = vmatprep.subr.mxu0 0.0
    %218 = vmatpush1.msra.mxu0 0.0
    %219 = vmatprep.subr.mxu0 0.0
    %220 = vmatpush1.msra.mxu0 0.0
    %221 = vmatprep.subr.mxu0 0.0
    %222 = vmatpush1.msra.mxu0 0.0
    %223 = vmatprep.subr.mxu0 0.0
    %224 = vmatpush1.msra.mxu0 0.0
    %225 = vmatprep.subr.mxu0 0.0
    %226 = vmatpush1.msra.mxu0 0.0
    %227 = vmatprep.subr.mxu0 0.0
    %228 = vmatpush1.msra.mxu0 0.0
    %229 = vmatprep.subr.mxu0 0.0
    %230 = vmatpush1.msra.mxu0 0.0
    %231 = vmatprep.subr.mxu0 0.0
    %232 = vmatpush1.msra.mxu0 0.0
    %233 = vmatprep.subr.mxu0 0.0
    %234 = vmatpush1.msra.mxu0 0.0
    %235 = vmatprep.subr.mxu0 0.0
    %236 = vmatpush1.msra.mxu0 0.0
    %237 = vmatprep.subr.mxu0 0.0
    %238 = vmatpush1.msra.mxu0 0.0
    %239 = vmatprep.subr.mxu0 0.0
    %240 = vmatpush1.msra.mxu0 0.0
    %241 = vmatprep.subr.mxu0 0.0
    %242 = vmatpush1.msra.mxu0 0.0
    %243 = vmatprep.subr.mxu0 0.0
    %244 = vmatpush1.msra.mxu0 0.0
    %245 = vmatprep.subr.mxu0 0.0
    %246 = vmatpush1.msra.mxu0 0.0
    %247 = vmatprep.subr.mxu0 0.0
    %248 = vmatpush1.msra.mxu0 0.0
    %249 = vmatprep.subr.mxu0 0.0
    %250 = vmatpush1.msra.mxu0 0.0
    %251 = vmatprep.subr.mxu0 0.0
    %252 = vmatpush1.msra.mxu0 0.0
    %253 = vmatprep.subr.mxu0 0.0
    %254 = vmatpush1.msra.mxu0 0.0
    %255 = vmatprep.subr.mxu0 0.0
    %256 = vmatpush1.msra.mxu0 0.0
    %257 = vmatprep.subr.mxu0 0.0
    %258 = vmatpush1.msra.mxu0 0.0
    %259 = vmatprep.subr.mxu0 0.0
    %260 = vmatpush1.msra.mxu0 0.0
    %261 = vmatprep.subr.mxu0 0.0
    %262 = vmatpush1.msra.mxu0 0.0
    %263 = vmatprep.mubr.f32.mxu0 0.0
    %264 = vmatmul.mubr.f32.gmra.mrb[0].mxu0 %v191
    %v265 = vpop.f32.mrb[0].mxu0
    %v266 = vadd.f32 %v188, %v265
    %v267 = vpop.f32.mrb[0].mxu0
    %268 = vmatprep.mubr.f32.mxu0 0.0
    %269 = vmatmul.mubr.f32.gmra.mrb[0].mxu0 %v194
    %v270 = vpop.f32.mrb[0].mxu0
    %v271 = vadd.f32 %v188, %v270
    %v272 = vpop.f32.mrb[0].mxu0
    %273 = vmatprep.mubr.f32.mxu0 0.0
    %274 = vmatmul.mubr.f32.gmra.mrb[0].mxu0 %v197
    %v275 = vpop.f32.mrb[0].mxu0
    %v276 = vadd.f32 %v188, %v275
    %v277 = vpop.f32.mrb[0].mxu0
    %278 = vdwg.mxu0
    %279 = vst.msk [vmem:[#allocation10] sm:$0xff] %vm95, %v266
    %280 = vst.msk [vmem:[#allocation10 + $0x8] sm:$0xff] %vm95, %v271
    %281 = vst.msk [vmem:[#allocation10 + $0x10] sm:$0xf] %vm102, %v276
    %v282 = vld [vmem:[#allocation7] sm:$0xff]
    %v283 = vld [vmem:[#allocation7 + $0x8] sm:$0xff]
    %v284 = vld [vmem:[#allocation7 + $0x10] sm:$0xff]
    %v285 = vld [vmem:[#allocation7 + $0x18] sm:$0xff]
    %v286 = vld [vmem:[%s6] sm:$0x1]
    %v288 = vlaneseq
    %v289 = vshrl.u32 %v288, 7
    %v290 = vsub.s32 0, %v289
    %v291 = vrot.slane %v286, %v290
    %293 = vmatprep.subr.mxu0 0.0
    %294 = vmatpush1.msra.mxu0 %v282
    %295 = vmatprep.subr.mxu0 0.0
    %296 = vmatpush1.msra.mxu0 %v283
    %297 = vmatprep.subr.mxu0 0.0
    %298 = vmatpush1.msra.mxu0 %v284
    %299 = vmatprep.subr.mxu0 0.0
    %300 = vmatpush1.msra.mxu0 %v285
    %301 = vmatprep.subr.mxu0 0.0
    %302 = vmatpush1.msra.mxu0 0.0
    %303 = vmatprep.subr.mxu0 0.0
    %304 = vmatpush1.msra.mxu0 0.0
    %305 = vmatprep.subr.mxu0 0.0
    %306 = vmatpush1.msra.mxu0 0.0
    %307 = vmatprep.subr.mxu0 0.0
    %308 = vmatpush1.msra.mxu0 0.0
    %309 = vmatprep.subr.mxu0 0.0
    %310 = vmatpush1.msra.mxu0 0.0
    %311 = vmatprep.subr.mxu0 0.0
    %312 = vmatpush1.msra.mxu0 0.0
    %313 = vmatprep.subr.mxu0 0.0
    %314 = vmatpush1.msra.mxu0 0.0
    %315 = vmatprep.subr.mxu0 0.0
    %316 = vmatpush1.msra.mxu0 0.0
    %317 = vmatprep.subr.mxu0 0.0
    %318 = vmatpush1.msra.mxu0 0.0
    %319 = vmatprep.subr.mxu0 0.0
    %320 = vmatpush1.msra.mxu0 0.0
    %321 = vmatprep.subr.mxu0 0.0
    %322 = vmatpush1.msra.mxu0 0.0
    %323 = vmatprep.subr.mxu0 0.0
    %324 = vmatpush1.msra.mxu0 0.0
    %325 = vmatprep.subr.mxu0 0.0
    %326 = vmatpush1.msra.mxu0 0.0
    %327 = vmatprep.subr.mxu0 0.0
    %328 = vmatpush1.msra.mxu0 0.0
    %329 = vmatprep.subr.mxu0 0.0
    %330 = vmatpush1.msra.mxu0 0.0
    %331 = vmatprep.subr.mxu0 0.0
    %332 = vmatpush1.msra.mxu0 0.0
    %333 = vmatprep.subr.mxu0 0.0
    %334 = vmatpush1.msra.mxu0 0.0
    %335 = vmatprep.subr.mxu0 0.0
    %336 = vmatpush1.msra.mxu0 0.0
    %337 = vmatprep.subr.mxu0 0.0
    %338 = vmatpush1.msra.mxu0 0.0
    %339 = vmatprep.subr.mxu0 0.0
    %340 = vmatpush1.msra.mxu0 0.0
    %341 = vmatprep.subr.mxu0 0.0
    %342 = vmatpush1.msra.mxu0 0.0
    %343 = vmatprep.subr.mxu0 0.0
    %344 = vmatpush1.msra.mxu0 0.0
    %345 = vmatprep.subr.mxu0 0.0
    %346 = vmatpush1.msra.mxu0 0.0
    %347 = vmatprep.subr.mxu0 0.0
    %348 = vmatpush1.msra.mxu0 0.0
    %349 = vmatprep.subr.mxu0 0.0
    %350 = vmatpush1.msra.mxu0 0.0
    %351 = vmatprep.subr.mxu0 0.0
    %352 = vmatpush1.msra.mxu0 0.0
    %353 = vmatprep.subr.mxu0 0.0
    %354 = vmatpush1.msra.mxu0 0.0
    %355 = vmatprep.subr.mxu0 0.0
    %356 = vmatpush1.msra.mxu0 0.0
    %357 = vmatprep.mubr.f32.mxu0 0.0
    %358 = vmatmul.mubr.f32.gmra.mrb[0].mxu0 %v191
    %v359 = vpop.f32.mrb[0].mxu0
    %v360 = vadd.f32 %v291, %v359
    %v361 = vpop.f32.mrb[0].mxu0
    %362 = vmatprep.mubr.f32.mxu0 0.0
    %363 = vmatmul.mubr.f32.gmra.mrb[0].mxu0 %v194
    %v364 = vpop.f32.mrb[0].mxu0
    %v365 = vadd.f32 %v291, %v364
    %v366 = vpop.f32.mrb[0].mxu0
    %367 = vmatprep.mubr.f32.mxu0 0.0
    %368 = vmatmul.mubr.f32.gmra.mrb[0].mxu0 %v197
    %v369 = vpop.f32.mrb[0].mxu0
    %v370 = vadd.f32 %v291, %v369
    %v371 = vpop.f32.mrb[0].mxu0
    %372 = vdwg.mxu0
    %373 = vst.msk [vmem:[#allocation11] sm:$0xff] %vm95, %v360
    %374 = vst.msk [vmem:[#allocation11 + $0x8] sm:$0xff] %vm95, %v365
    %375 = vst.msk [vmem:[#allocation11 + $0x10] sm:$0xf] %vm102, %v370
    %v376 = vld [vmem:[#allocation8] sm:$0xff]
    %v377 = vld [vmem:[#allocation8 + $0x8] sm:$0xff]
    %v378 = vld [vmem:[#allocation8 + $0x10] sm:$0xff]
    %v379 = vld [vmem:[#allocation8 + $0x18] sm:$0xff]
    %v380 = vld [vmem:[%s8] sm:$0x1]
    %v382 = vlaneseq
    %v383 = vshrl.u32 %v382, 7
    %v384 = vsub.s32 0, %v383
    %v385 = vrot.slane %v380, %v384
    %387 = vmatprep.subr.mxu0 0.0
    %388 = vmatpush1.msra.mxu0 %v376
    %389 = vmatprep.subr.mxu0 0.0
    %390 = vmatpush1.msra.mxu0 %v377
    %391 = vmatprep.subr.mxu0 0.0
    %392 = vmatpush1.msra.mxu0 %v378
    %393 = vmatprep.subr.mxu0 0.0
    %394 = vmatpush1.msra.mxu0 %v379
    %395 = vmatprep.subr.mxu0 0.0
    %396 = vmatpush1.msra.mxu0 0.0
    %397 = vmatprep.subr.mxu0 0.0
    %398 = vmatpush1.msra.mxu0 0.0
    %399 = vmatprep.subr.mxu0 0.0
    %400 = vmatpush1.msra.mxu0 0.0
    %401 = vmatprep.subr.mxu0 0.0
    %402 = vmatpush1.msra.mxu0 0.0
    %403 = vmatprep.subr.mxu0 0.0
    %404 = vmatpush1.msra.mxu0 0.0
    %405 = vmatprep.subr.mxu0 0.0
    %406 = vmatpush1.msra.mxu0 0.0
    %407 = vmatprep.subr.mxu0 0.0
    %408 = vmatpush1.msra.mxu0 0.0
    %409 = vmatprep.subr.mxu0 0.0
    %410 = vmatpush1.msra.mxu0 0.0
    %411 = vmatprep.subr.mxu0 0.0
    %412 = vmatpush1.msra.mxu0 0.0
    %413 = vmatprep.subr.mxu0 0.0
    %414 = vmatpush1.msra.mxu0 0.0
    %415 = vmatprep.subr.mxu0 0.0
    %416 = vmatpush1.msra.mxu0 0.0
    %417 = vmatprep.subr.mxu0 0.0
    %418 = vmatpush1.msra.mxu0 0.0
    %419 = vmatprep.subr.mxu0 0.0
    %420 = vmatpush1.msra.mxu0 0.0
    %421 = vmatprep.subr.mxu0 0.0
    %422 = vmatpush1.msra.mxu0 0.0
    %423 = vmatprep.subr.mxu0 0.0
    %424 = vmatpush1.msra.mxu0 0.0
    %425 = vmatprep.subr.mxu0 0.0
    %426 = vmatpush1.msra.mxu0 0.0
    %427 = vmatprep.subr.mxu0 0.0
    %428 = vmatpush1.msra.mxu0 0.0
    %429 = vmatprep.subr.mxu0 0.0
    %430 = vmatpush1.msra.mxu0 0.0
    %431 = vmatprep.subr.mxu0 0.0
    %432 = vmatpush1.msra.mxu0 0.0
    %433 = vmatprep.subr.mxu0 0.0
    %434 = vmatpush1.msra.mxu0 0.0
    %435 = vmatprep.subr.mxu0 0.0
    %436 = vmatpush1.msra.mxu0 0.0
    %437 = vmatprep.subr.mxu0 0.0
    %438 = vmatpush1.msra.mxu0 0.0
    %439 = vmatprep.subr.mxu0 0.0
    %440 = vmatpush1.msra.mxu0 0.0
    %441 = vmatprep.subr.mxu0 0.0
    %442 = vmatpush1.msra.mxu0 0.0
    %443 = vmatprep.subr.mxu0 0.0
    %444 = vmatpush1.msra.mxu0 0.0
    %445 = vmatprep.subr.mxu0 0.0
    %446 = vmatpush1.msra.mxu0 0.0
    %447 = vmatprep.subr.mxu0 0.0
    %448 = vmatpush1.msra.mxu0 0.0
    %449 = vmatprep.subr.mxu0 0.0
    %450 = vmatpush1.msra.mxu0 0.0
    %451 = vmatprep.mubr.f32.mxu0 0.0
    %452 = vmatmul.mubr.f32.gmra.mrb[0].mxu0 %v191
    %v453 = vpop.f32.mrb[0].mxu0
    %v454 = vadd.f32 %v385, %v453
    %v455 = vpop.f32.mrb[0].mxu0
    %456 = vmatprep.mubr.f32.mxu0 0.0
    %457 = vmatmul.mubr.f32.gmra.mrb[0].mxu0 %v194
    %v458 = vpop.f32.mrb[0].mxu0
    %v459 = vadd.f32 %v385, %v458
    %v460 = vpop.f32.mrb[0].mxu0
    %461 = vmatprep.mubr.f32.mxu0 0.0
    %462 = vmatmul.mubr.f32.gmra.mrb[0].mxu0 %v197
    %v463 = vpop.f32.mrb[0].mxu0
    %v464 = vadd.f32 %v385, %v463
    %v465 = vpop.f32.mrb[0].mxu0
    %466 = vdwg.mxu0
    %467 = vst.msk [vmem:[#allocation13] sm:$0xff] %vm95, %v454
    %468 = vst.msk [vmem:[#allocation13 + $0x8] sm:$0xff] %vm95, %v459
    %469 = vst.msk [vmem:[#allocation13 + $0x10] sm:$0xf] %vm102, %v464
    // Predicated region
    $region54: #{tpu_custom_call.1} parent=1 // pred_check
      _
    $region55: #{tpu_custom_call.1} parent=1 // pred_check_branch
      %471 = sbr.rel (0) target = $region57
    $region56: #{tpu_custom_call.1} parent=1 // pred_region
      %s473 = ssub.s32 384, 384
      %474 = vsyncadd [#allocation4], %s473
      %s475 = sshll.u32 [#allocation10], 4
      %s476 = int_to_ptr.vmem [resolvable:$true] %s475
      %481 = dma.vmem_to_hbm [thread:$0]  %s476, 384, %s9, [#allocation4], 128, 128, 8
    $region57: #{tpu_custom_call.1} parent=1 // pred_fallthru
      _
    // Predicated region
    $region58: #{tpu_custom_call.1} parent=1 // pred_check
      _
    $region59: #{tpu_custom_call.1} parent=1 // pred_check_branch
      %483 = sbr.rel (0) target = $region61
    $region60: #{tpu_custom_call.1} parent=1 // pred_region
      %s485 = ssub.s32 384, 384
      %486 = vsyncadd [#allocation12], %s485
      %s487 = sshll.u32 [#allocation11], 4
      %s488 = int_to_ptr.vmem [resolvable:$true] %s487
      %493 = dma.vmem_to_hbm [thread:$0]  %s488, 384, %s10, [#allocation12], 128, 128, 8
    $region61: #{tpu_custom_call.1} parent=1 // pred_fallthru
      _
    // Predicated region
    $region62: #{tpu_custom_call.1} parent=1 // pred_check
      _
    $region63: #{tpu_custom_call.1} parent=1 // pred_check_branch
      %495 = sbr.rel (0) target = $region65
    $region64: #{tpu_custom_call.1} parent=1 // pred_region
      %s497 = ssub.s32 384, 384
      %498 = vsyncadd [#allocation12], %s497
      %s499 = sshll.u32 [#allocation13], 4
      %s500 = int_to_ptr.vmem [resolvable:$true] %s499
      %505 = dma.vmem_to_hbm [thread:$0]  %s500, 384, %s11, [#allocation12], 128, 128, 8
    $region65: #{tpu_custom_call.1} parent=1 // pred_fallthru
      _
    // Predicated region
    $region66: #{tpu_custom_call.1} parent=1 // pred_check
      _
    $region67: #{tpu_custom_call.1} parent=1 // pred_check_branch
      %507 = sbr.rel (0) target = $region69
    $region68: #{tpu_custom_call.1} parent=1 // pred_region
      %508 = dma.done [#allocation4], 384
    $region69: #{tpu_custom_call.1} parent=1 // pred_fallthru
      _
    // Predicated region
    $region70: #{tpu_custom_call.1} parent=1 // pred_check
      _
    $region71: #{tpu_custom_call.1} parent=1 // pred_check_branch
      %510 = sbr.rel (0) target = $region73
    $region72: #{tpu_custom_call.1} parent=1 // pred_region
      %511 = dma.done [#allocation12], 384
    $region73: #{tpu_custom_call.1} parent=1 // pred_fallthru
      _
    // Predicated region
    $region74: #{tpu_custom_call.1} parent=1 // pred_check
      _
    $region75: #{tpu_custom_call.1} parent=1 // pred_check_branch
      %513 = sbr.rel (0) target = $region77
    $region76: #{tpu_custom_call.1} parent=1 // pred_region
      %514 = dma.done [#allocation12], 384
    $region77: #{tpu_custom_call.1} parent=1 // pred_fallthru
      _
    %515 = vsyncpa [#allocation3], 1
    %516 = vsyncpa [#allocation6], 1
    %517 = vsyncpa [#allocation9], 1
    %518 = vsyncpa [#allocation4], 1
    %519 = vsyncpa [#allocation12], 1

</llo_original>
